<compile_context>
chip_gen: v7x
topology: tpu7x:2x2x1
jax: 0.10.0
libtpu: 0.0.40
codegen_flags: <defaults>
</compile_context>

<pallas_src>
import jax
import jax.numpy as jnp
from jax.experimental import pallas as pl
from jax.experimental.pallas import tpu as pltpu


# ----------------------------------------------------------------------------
# Fused kernel: 4x (3-tap conv along T + ReLU), Bb batch elements per grid step.
# ----------------------------------------------------------------------------
def _tcae_kernel(x_ref, w1_ref, b1_ref, w2_ref, b2_ref, w3_ref, b3_ref,
                 w4_ref, b4_ref, o_ref):
    Bb, T, D = x_ref.shape
    R = Bb * T

    # Per-batch boundary masks for the +-1 time shifts (tiny (R,1) iota, VPU).
    # Row r belongs to batch element r // T at time t = r % T.
    t_idx = jax.lax.broadcasted_iota(jnp.int32, (R, 1), 0) % T
    keep_m1 = t_idx != 0          # t = 0     has no t-1 neighbour (zero pad)
    keep_p1 = t_idx != (T - 1)    # t = T-1   has no t+1 neighbour (zero pad)

    def conv3_relu(v, w_ref, b_ref):
        # v: (R, Cin); w_ref: (3*Cin, Cout) = taps [x[t-1] | x[t] | x[t+1]];
        # b_ref: (1, Cout).
        # Shifts via XLU roll; wrap-around / cross-batch rows are masked to 0.
        v_m1 = jnp.where(keep_m1, pltpu.roll(v, shift=1, axis=0), 0.0)
        v_p1 = jnp.where(keep_p1, pltpu.roll(v, shift=R - 1, axis=0), 0.0)
        v3 = jnp.concatenate([v_m1, v, v_p1], axis=-1)          # (R, 3*Cin)
        y = jnp.dot(v3, w_ref[...],
                    preferred_element_type=jnp.float32) + b_ref[...]
        return jnp.maximum(y, 0.0)

    h = x_ref[...].reshape(R, D)          # channel-last, batch rows stacked
    h = conv3_relu(h, w1_ref, b1_ref)     # Conv1d(D -> C)   + ReLU
    h = conv3_relu(h, w2_ref, b2_ref)     # Conv1d(C -> C)   + ReLU
    h = conv3_relu(h, w3_ref, b3_ref)     # ConvT1d(C -> C)  + ReLU
    h = conv3_relu(h, w4_ref, b4_ref)     # ConvT1d(C -> D)  + ReLU
    o_ref[...] = h.reshape(Bb, T, D).astype(o_ref.dtype)


def _pick_block_b(B):
    """Largest divisor of B that keeps >=2 grid steps (v7x has 2 TensorCores);
    on single-TC v5e/v6e this also minimizes step count."""
    if B <= 1:
        return 1
    bb = B // 2
    while B % bb:
        bb -= 1
    return bb


# ----------------------------------------------------------------------------
# Wrapper: absorbs the PyTorch permutes / ConvTranspose flips into weight
# layout and launches one fused pallas_call with a batch-parallel grid.
# ----------------------------------------------------------------------------
def temporal_cnn_autoencoder(x, p, block_b=None):
    """x: (B, T, input_dim) -> (B, T, input_dim)."""
    B, T, D = x.shape
    C = p['enc1_w'].shape[0]

    if block_b is None:
        block_b = _pick_block_b(B)
    assert B % block_b == 0, "batch must be divisible by block_b"
    grid_b = B // block_b

    # Conv1d weight (Cout, Cin, 3) -> (3, Cin, Cout) taps -> (3*Cin, Cout).
    # Tap 0 multiplies x[t-1], tap 1 x[t], tap 2 x[t+1].
    w1 = jnp.transpose(p['enc1_w'], (2, 1, 0)).reshape(3 * D, C)
    w2 = jnp.transpose(p['enc2_w'], (2, 1, 0)).reshape(3 * C, C)
    # ConvTranspose1d weight (Cin, Cout, 3): equivalent conv taps are the
    # transpose to (3, Cin, Cout) with the tap axis flipped.
    w3 = jnp.flip(jnp.transpose(p['dec1_w'], (2, 0, 1)), axis=0).reshape(3 * C, C)
    w4 = jnp.flip(jnp.transpose(p['dec2_w'], (2, 0, 1)), axis=0).reshape(3 * C, D)

    b1 = p['enc1_b'].reshape(1, -1)
    b2 = p['enc2_b'].reshape(1, -1)
    b3 = p['dec1_b'].reshape(1, -1)
    b4 = p['dec2_b'].reshape(1, -1)

    def const2d(shape):
        return pl.BlockSpec(shape, lambda b: (0, 0))

    return pl.pallas_call(
        _tcae_kernel,
        out_shape=jax.ShapeDtypeStruct((B, T, D), jnp.float32),
        grid_spec=pltpu.PrefetchScalarGridSpec(
            num_scalar_prefetch=0,
            grid=(grid_b,),
            in_specs=[
                pl.BlockSpec((block_b, T, D), lambda b: (b, 0, 0)),
                const2d((3 * D, C)), const2d((1, C)),
                const2d((3 * C, C)), const2d((1, C)),
                const2d((3 * C, C)), const2d((1, C)),
                const2d((3 * C, D)), const2d((1, D)),
            ],
            out_specs=pl.BlockSpec((block_b, T, D), lambda b: (b, 0, 0)),
        ),
        compiler_params=pltpu.CompilerParams(
            dimension_semantics=("parallel",)),
    )(x, w1, b1, w2, b2, w3, b3, w4, b4)


# ----------------------------------------------------------------------------
# Pure-JAX reference (lax.conv in PyTorch's NCH layout) for correctness check.
# ----------------------------------------------------------------------------
def _ref_forward(x, p):
    hp = jax.lax.Precision.HIGHEST

    def conv(h, w, b):
        y = jax.lax.conv_general_dilated(
            h, w, (1,), ((1, 1),),
            dimension_numbers=('NCH', 'OIH', 'NCH'), precision=hp)
        return jax.nn.relu(y + b[None, :, None])

    def convT(h, w, b):
        # ConvTranspose1d(k=3, s=1, p=1) == conv with flipped kernel, swapped
        # in/out channels, padding 1.
        w_eq = jnp.transpose(w, (1, 0, 2))[:, :, ::-1]
        y = jax.lax.conv_general_dilated(
            h, w_eq, (1,), ((1, 1),),
            dimension_numbers=('NCH', 'OIH', 'NCH'), precision=hp)
        return jax.nn.relu(y + b[None, :, None])

    h = jnp.transpose(x, (0, 2, 1))              # (B, D, T)
    h = conv(h, p['enc1_w'], p['enc1_b'])
    h = conv(h, p['enc2_w'], p['enc2_b'])
    h = convT(h, p['dec1_w'], p['dec1_b'])
    h = convT(h, p['dec2_w'], p['dec2_b'])
    return jnp.transpose(h, (0, 2, 1))           # (B, T, D)


def init_params(key, input_dim, cnn_channels):
    ks = jax.random.split(key, 8)

    def rnd(k, shape):
        return 0.1 * jax.random.normal(k, shape, jnp.float32)

    return {
        # Conv1d weights: (out_channels, in_channels, 3)
        'enc1_w': rnd(ks[0], (cnn_channels, input_dim, 3)),
        'enc1_b': rnd(ks[1], (cnn_channels,)),
        'enc2_w': rnd(ks[2], (cnn_channels, cnn_channels, 3)),
        'enc2_b': rnd(ks[3], (cnn_channels,)),
        # ConvTranspose1d weights: (in_channels, out_channels, 3)
        'dec1_w': rnd(ks[4], (cnn_channels, cnn_channels, 3)),
        'dec1_b': rnd(ks[5], (cnn_channels,)),
        'dec2_w': rnd(ks[6], (cnn_channels, input_dim, 3)),
        'dec2_b': rnd(ks[7], (input_dim,)),
    }


if __name__ == "__main__":
    input_dim, cnn_channels, T = 8, 32, 16

    key = jax.random.PRNGKey(0)
    k_params, k_x1, k_x2 = jax.random.split(key, 3)
    params = init_params(k_params, input_dim, cnn_channels)

    # Case 1: tiny batch (Bb=1, grid=2) — matches the module's typical use.
    # Case 2: larger batch (Bb=4, grid=2) — exercises the batch-blocked path.
    for B, kx in [(2, k_x1), (8, k_x2)]:
        x = jax.random.normal(kx, (B, T, input_dim), jnp.float32)
        y = jax.block_until_ready(temporal_cnn_autoencoder(x, params))
        y_ref = _ref_forward(x, params)
        assert y.shape == (B, T, input_dim)
        max_err = float(jnp.max(jnp.abs(y - y_ref)))
        assert jnp.allclose(y, y_ref, atol=1e-5, rtol=1e-5), max_err

    print("KERNEL_OK")
</pallas_src>

<mosaic_0001>
module attributes {stable_mosaic.version = 11 : i64} {
  func.func @_tcae_kernel(%arg0: i32, %arg1: memref<1x16x8xf32, #tpu.memory_space<vmem>>, %arg2: memref<24x32xf32, #tpu.memory_space<vmem>>, %arg3: memref<1x32xf32, #tpu.memory_space<vmem>>, %arg4: memref<96x32xf32, #tpu.memory_space<vmem>>, %arg5: memref<1x32xf32, #tpu.memory_space<vmem>>, %arg6: memref<96x32xf32, #tpu.memory_space<vmem>>, %arg7: memref<1x32xf32, #tpu.memory_space<vmem>>, %arg8: memref<96x8xf32, #tpu.memory_space<vmem>>, %arg9: memref<1x8xf32, #tpu.memory_space<vmem>>, %arg10: memref<1x16x8xf32, #tpu.memory_space<vmem>>) attributes {dimension_semantics = [#tpu.dimension_semantics<parallel>], iteration_bounds = array<i64: 2>, scalar_prefetch = 0 : i64, scratch_operands = 0 : i64, tpu.core_type = #tpu.core_type<tc>, window_params = [{transform_indices = @transform_0, window_bounds = array<i64: 1, 16, 8>}, {pipeline_mode = #tpu.pipeline_mode<synchronous>, transform_indices = @transform_1, window_bounds = array<i64: 24, 32>}, {pipeline_mode = #tpu.pipeline_mode<synchronous>, transform_indices = @transform_2, window_bounds = array<i64: 1, 32>}, {pipeline_mode = #tpu.pipeline_mode<synchronous>, transform_indices = @transform_3, window_bounds = array<i64: 96, 32>}, {pipeline_mode = #tpu.pipeline_mode<synchronous>, transform_indices = @transform_4, window_bounds = array<i64: 1, 32>}, {pipeline_mode = #tpu.pipeline_mode<synchronous>, transform_indices = @transform_5, window_bounds = array<i64: 96, 32>}, {pipeline_mode = #tpu.pipeline_mode<synchronous>, transform_indices = @transform_6, window_bounds = array<i64: 1, 32>}, {pipeline_mode = #tpu.pipeline_mode<synchronous>, transform_indices = @transform_7, window_bounds = array<i64: 96, 8>}, {pipeline_mode = #tpu.pipeline_mode<synchronous>, transform_indices = @transform_8, window_bounds = array<i64: 1, 8>}, {transform_indices = @transform_9, window_bounds = array<i64: 1, 16, 8>}]} {
    %0 = tpu.iota {dimensions = array<i32: 0>} : vector<16x1xi32>
    %c16_i32 = arith.constant 16 : i32
    %c0_i32 = arith.constant 0 : i32
    %1 = arith.cmpi eq, %c16_i32, %c0_i32 : i32
    %c1_i32 = arith.constant 1 : i32
    %2 = arith.select %1, %c1_i32, %c16_i32 : i32
    %3 = vector.broadcast %2 : i32 to vector<16x1xi32>
    %4 = arith.remsi %0, %3 : vector<16x1xi32>
    %c0_i32_0 = arith.constant 0 : i32
    %5 = vector.broadcast %c0_i32_0 : i32 to vector<16x1xi32>
    %6 = arith.cmpi ne, %4, %5 : vector<16x1xi32>
    %c0_i32_1 = arith.constant 0 : i32
    %7 = vector.broadcast %c0_i32_1 : i32 to vector<16x1xi32>
    %8 = arith.cmpi slt, %4, %7 : vector<16x1xi32>
    %c0_i32_2 = arith.constant 0 : i32
    %9 = arith.cmpi slt, %2, %c0_i32_2 : i32
    %10 = vector.broadcast %9 : i1 to vector<16x1xi1>
    %11 = vector.broadcast %10 : vector<16x1xi1> to vector<16x1xi1>
    %12 = arith.xori %8, %11 : vector<16x1xi1>
    %13 = arith.andi %12, %6 : vector<16x1xi1>
    %14 = vector.broadcast %2 : i32 to vector<16x1xi32>
    %15 = arith.addi %4, %14 : vector<16x1xi32>
    %16 = arith.select %13, %15, %4 : vector<16x1xi1>, vector<16x1xi32>
    %c0_i32_3 = arith.constant 0 : i32
    %17 = vector.broadcast %c0_i32_3 : i32 to vector<16x1xi32>
    %18 = arith.cmpi ne, %16, %17 : vector<16x1xi32>
    %c15_i32 = arith.constant 15 : i32
    %19 = vector.broadcast %c15_i32 : i32 to vector<16x1xi32>
    %20 = arith.cmpi ne, %16, %19 : vector<16x1xi32>
    %c0 = arith.constant 0 : index
    %c0_4 = arith.constant 0 : index
    %c0_5 = arith.constant 0 : index
    %21 = vector.load %arg1[%c0, %c0_4, %c0_5] : memref<1x16x8xf32, #tpu.memory_space<vmem>>, vector<1x16x8xf32>
    %22 = vector.shape_cast %21 : vector<1x16x8xf32> to vector<16x8xf32>
    %c1_i32_6 = arith.constant 1 : i32
    %23 = tpu.dynamic_rotate %22 by %c1_i32_6 dim 0 : vector<16x8xf32>, i32 -> vector<16x8xf32>
    %cst = arith.constant 0.000000e+00 : f32
    %24 = vector.shape_cast %18 : vector<16x1xi1> to vector<16x1xi1>
    %25 = vector.broadcast %24 : vector<16x1xi1> to vector<16x8xi1>
    %26 = vector.broadcast %cst : f32 to vector<16x8xf32>
    %27 = arith.select %25, %23, %26 : vector<16x8xi1>, vector<16x8xf32>
    %c15_i32_7 = arith.constant 15 : i32
    %28 = tpu.dynamic_rotate %22 by %c15_i32_7 dim 0 : vector<16x8xf32>, i32 -> vector<16x8xf32>
    %cst_8 = arith.constant 0.000000e+00 : f32
    %29 = vector.shape_cast %20 : vector<16x1xi1> to vector<16x1xi1>
    %30 = vector.broadcast %29 : vector<16x1xi1> to vector<16x8xi1>
    %31 = vector.broadcast %cst_8 : f32 to vector<16x8xf32>
    %32 = arith.select %30, %28, %31 : vector<16x8xi1>, vector<16x8xf32>
    %33 = tpu.concatenate %27, %22, %32 in 1 : vector<16x8xf32>, vector<16x8xf32>, vector<16x8xf32> -> vector<16x24xf32>
    %c0_9 = arith.constant 0 : index
    %c0_10 = arith.constant 0 : index
    %34 = vector.load %arg2[%c0_9, %c0_10] : memref<24x32xf32, #tpu.memory_space<vmem>>, vector<24x32xf32>
    %cst_11 = arith.constant dense<0.000000e+00> : vector<16x32xf32>
    %35 = tpu.matmul %33, %34, %cst_11 {dimension_numbers = #tpu.dot_dimension_numbers<[1], [0], [0], [1], [0, 0, 1, 1], [], []>} : vector<16x24xf32>, vector<24x32xf32>, vector<16x32xf32> -> vector<16x32xf32>
    %c0_12 = arith.constant 0 : index
    %c0_13 = arith.constant 0 : index
    %36 = vector.load %arg3[%c0_12, %c0_13] : memref<1x32xf32, #tpu.memory_space<vmem>>, vector<1x32xf32>
    %37 = vector.broadcast %36 : vector<1x32xf32> to vector<16x32xf32>
    %38 = arith.addf %35, %37 : vector<16x32xf32>
    %cst_14 = arith.constant 0.000000e+00 : f32
    %39 = vector.broadcast %cst_14 : f32 to vector<16x32xf32>
    %40 = arith.maximumf %38, %39 : vector<16x32xf32>
    %c1_i32_15 = arith.constant 1 : i32
    %41 = tpu.dynamic_rotate %40 by %c1_i32_15 dim 0 : vector<16x32xf32>, i32 -> vector<16x32xf32>
    %cst_16 = arith.constant 0.000000e+00 : f32
    %42 = vector.shape_cast %18 : vector<16x1xi1> to vector<16x1xi1>
    %43 = vector.broadcast %42 : vector<16x1xi1> to vector<16x32xi1>
    %44 = vector.broadcast %cst_16 : f32 to vector<16x32xf32>
    %45 = arith.select %43, %41, %44 : vector<16x32xi1>, vector<16x32xf32>
    %c15_i32_17 = arith.constant 15 : i32
    %46 = tpu.dynamic_rotate %40 by %c15_i32_17 dim 0 : vector<16x32xf32>, i32 -> vector<16x32xf32>
    %cst_18 = arith.constant 0.000000e+00 : f32
    %47 = vector.shape_cast %20 : vector<16x1xi1> to vector<16x1xi1>
    %48 = vector.broadcast %47 : vector<16x1xi1> to vector<16x32xi1>
    %49 = vector.broadcast %cst_18 : f32 to vector<16x32xf32>
    %50 = arith.select %48, %46, %49 : vector<16x32xi1>, vector<16x32xf32>
    %51 = tpu.concatenate %45, %40, %50 in 1 : vector<16x32xf32>, vector<16x32xf32>, vector<16x32xf32> -> vector<16x96xf32>
    %c0_19 = arith.constant 0 : index
    %c0_20 = arith.constant 0 : index
    %52 = vector.load %arg4[%c0_19, %c0_20] : memref<96x32xf32, #tpu.memory_space<vmem>>, vector<96x32xf32>
    %cst_21 = arith.constant dense<0.000000e+00> : vector<16x32xf32>
    %53 = tpu.matmul %51, %52, %cst_21 {dimension_numbers = #tpu.dot_dimension_numbers<[1], [0], [0], [1], [0, 0, 1, 1], [], []>} : vector<16x96xf32>, vector<96x32xf32>, vector<16x32xf32> -> vector<16x32xf32>
    %c0_22 = arith.constant 0 : index
    %c0_23 = arith.constant 0 : index
    %54 = vector.load %arg5[%c0_22, %c0_23] : memref<1x32xf32, #tpu.memory_space<vmem>>, vector<1x32xf32>
    %55 = vector.broadcast %54 : vector<1x32xf32> to vector<16x32xf32>
    %56 = arith.addf %53, %55 : vector<16x32xf32>
    %cst_24 = arith.constant 0.000000e+00 : f32
    %57 = vector.broadcast %cst_24 : f32 to vector<16x32xf32>
    %58 = arith.maximumf %56, %57 : vector<16x32xf32>
    %c1_i32_25 = arith.constant 1 : i32
    %59 = tpu.dynamic_rotate %58 by %c1_i32_25 dim 0 : vector<16x32xf32>, i32 -> vector<16x32xf32>
    %cst_26 = arith.constant 0.000000e+00 : f32
    %60 = vector.shape_cast %18 : vector<16x1xi1> to vector<16x1xi1>
    %61 = vector.broadcast %60 : vector<16x1xi1> to vector<16x32xi1>
    %62 = vector.broadcast %cst_26 : f32 to vector<16x32xf32>
    %63 = arith.select %61, %59, %62 : vector<16x32xi1>, vector<16x32xf32>
    %c15_i32_27 = arith.constant 15 : i32
    %64 = tpu.dynamic_rotate %58 by %c15_i32_27 dim 0 : vector<16x32xf32>, i32 -> vector<16x32xf32>
    %cst_28 = arith.constant 0.000000e+00 : f32
    %65 = vector.shape_cast %20 : vector<16x1xi1> to vector<16x1xi1>
    %66 = vector.broadcast %65 : vector<16x1xi1> to vector<16x32xi1>
    %67 = vector.broadcast %cst_28 : f32 to vector<16x32xf32>
    %68 = arith.select %66, %64, %67 : vector<16x32xi1>, vector<16x32xf32>
    %69 = tpu.concatenate %63, %58, %68 in 1 : vector<16x32xf32>, vector<16x32xf32>, vector<16x32xf32> -> vector<16x96xf32>
    %c0_29 = arith.constant 0 : index
    %c0_30 = arith.constant 0 : index
    %70 = vector.load %arg6[%c0_29, %c0_30] : memref<96x32xf32, #tpu.memory_space<vmem>>, vector<96x32xf32>
    %cst_31 = arith.constant dense<0.000000e+00> : vector<16x32xf32>
    %71 = tpu.matmul %69, %70, %cst_31 {dimension_numbers = #tpu.dot_dimension_numbers<[1], [0], [0], [1], [0, 0, 1, 1], [], []>} : vector<16x96xf32>, vector<96x32xf32>, vector<16x32xf32> -> vector<16x32xf32>
    %c0_32 = arith.constant 0 : index
    %c0_33 = arith.constant 0 : index
    %72 = vector.load %arg7[%c0_32, %c0_33] : memref<1x32xf32, #tpu.memory_space<vmem>>, vector<1x32xf32>
    %73 = vector.broadcast %72 : vector<1x32xf32> to vector<16x32xf32>
    %74 = arith.addf %71, %73 : vector<16x32xf32>
    %cst_34 = arith.constant 0.000000e+00 : f32
    %75 = vector.broadcast %cst_34 : f32 to vector<16x32xf32>
    %76 = arith.maximumf %74, %75 : vector<16x32xf32>
    %c1_i32_35 = arith.constant 1 : i32
    %77 = tpu.dynamic_rotate %76 by %c1_i32_35 dim 0 : vector<16x32xf32>, i32 -> vector<16x32xf32>
    %cst_36 = arith.constant 0.000000e+00 : f32
    %78 = vector.shape_cast %18 : vector<16x1xi1> to vector<16x1xi1>
    %79 = vector.broadcast %78 : vector<16x1xi1> to vector<16x32xi1>
    %80 = vector.broadcast %cst_36 : f32 to vector<16x32xf32>
    %81 = arith.select %79, %77, %80 : vector<16x32xi1>, vector<16x32xf32>
    %c15_i32_37 = arith.constant 15 : i32
    %82 = tpu.dynamic_rotate %76 by %c15_i32_37 dim 0 : vector<16x32xf32>, i32 -> vector<16x32xf32>
    %cst_38 = arith.constant 0.000000e+00 : f32
    %83 = vector.shape_cast %20 : vector<16x1xi1> to vector<16x1xi1>
    %84 = vector.broadcast %83 : vector<16x1xi1> to vector<16x32xi1>
    %85 = vector.broadcast %cst_38 : f32 to vector<16x32xf32>
    %86 = arith.select %84, %82, %85 : vector<16x32xi1>, vector<16x32xf32>
    %87 = tpu.concatenate %81, %76, %86 in 1 : vector<16x32xf32>, vector<16x32xf32>, vector<16x32xf32> -> vector<16x96xf32>
    %c0_39 = arith.constant 0 : index
    %c0_40 = arith.constant 0 : index
    %88 = vector.load %arg8[%c0_39, %c0_40] : memref<96x8xf32, #tpu.memory_space<vmem>>, vector<96x8xf32>
    %cst_41 = arith.constant dense<0.000000e+00> : vector<16x8xf32>
    %89 = tpu.matmul %87, %88, %cst_41 {dimension_numbers = #tpu.dot_dimension_numbers<[1], [0], [0], [1], [0, 0, 1, 1], [], []>} : vector<16x96xf32>, vector<96x8xf32>, vector<16x8xf32> -> vector<16x8xf32>
    %c0_42 = arith.constant 0 : index
    %c0_43 = arith.constant 0 : index
    %90 = vector.load %arg9[%c0_42, %c0_43] : memref<1x8xf32, #tpu.memory_space<vmem>>, vector<1x8xf32>
    %91 = vector.broadcast %90 : vector<1x8xf32> to vector<16x8xf32>
    %92 = arith.addf %89, %91 : vector<16x8xf32>
    %cst_44 = arith.constant 0.000000e+00 : f32
    %93 = vector.broadcast %cst_44 : f32 to vector<16x8xf32>
    %94 = arith.maximumf %92, %93 : vector<16x8xf32>
    %95 = vector.shape_cast %94 : vector<16x8xf32> to vector<1x16x8xf32>
    %c0_45 = arith.constant 0 : index
    %c0_46 = arith.constant 0 : index
    %c0_47 = arith.constant 0 : index
    %96 = vector.load %arg10[%c0_45, %c0_46, %c0_47] : memref<1x16x8xf32, #tpu.memory_space<vmem>>, vector<1x16x8xf32>
    tpu.vector_store %arg10[%c0_45, %c0_46, %c0_47], %95 {strides = array<i32>} : memref<1x16x8xf32, #tpu.memory_space<vmem>>, vector<1x16x8xf32>,
    return
  }
  func.func @transform_0(%arg0: i32) -> (i32, i32, i32) {
    %c0_i32 = arith.constant 0 : i32
    %c0_i32_0 = arith.constant 0 : i32
    %c0_i32_1 = arith.constant 0 : i32
    return %arg0, %c0_i32, %c0_i32_0 : i32, i32, i32
  }
  func.func @transform_1(%arg0: i32) -> (i32, i32) {
    %c0_i32 = arith.constant 0 : i32
    %c0_i32_0 = arith.constant 0 : i32
    %c0_i32_1 = arith.constant 0 : i32
    return %c0_i32, %c0_i32_0 : i32, i32
  }
  func.func @transform_2(%arg0: i32) -> (i32, i32) {
    %c0_i32 = arith.constant 0 : i32
    %c0_i32_0 = arith.constant 0 : i32
    %c0_i32_1 = arith.constant 0 : i32
    return %c0_i32, %c0_i32_0 : i32, i32
  }
  func.func @transform_3(%arg0: i32) -> (i32, i32) {
    %c0_i32 = arith.constant 0 : i32
    %c0_i32_0 = arith.constant 0 : i32
    %c0_i32_1 = arith.constant 0 : i32
    return %c0_i32, %c0_i32_0 : i32, i32
  }
  func.func @transform_4(%arg0: i32) -> (i32, i32) {
    %c0_i32 = arith.constant 0 : i32
    %c0_i32_0 = arith.constant 0 : i32
    %c0_i32_1 = arith.constant 0 : i32
    return %c0_i32, %c0_i32_0 : i32, i32
  }
  func.func @transform_5(%arg0: i32) -> (i32, i32) {
    %c0_i32 = arith.constant 0 : i32
    %c0_i32_0 = arith.constant 0 : i32
    %c0_i32_1 = arith.constant 0 : i32
    return %c0_i32, %c0_i32_0 : i32, i32
  }
  func.func @transform_6(%arg0: i32) -> (i32, i32) {
    %c0_i32 = arith.constant 0 : i32
    %c0_i32_0 = arith.constant 0 : i32
    %c0_i32_1 = arith.constant 0 : i32
    return %c0_i32, %c0_i32_0 : i32, i32
  }
  func.func @transform_7(%arg0: i32) -> (i32, i32) {
    %c0_i32 = arith.constant 0 : i32
    %c0_i32_0 = arith.constant 0 : i32
    %c0_i32_1 = arith.constant 0 : i32
    return %c0_i32, %c0_i32_0 : i32, i32
  }
  func.func @transform_8(%arg0: i32) -> (i32, i32) {
    %c0_i32 = arith.constant 0 : i32
    %c0_i32_0 = arith.constant 0 : i32
    %c0_i32_1 = arith.constant 0 : i32
    return %c0_i32, %c0_i32_0 : i32, i32
  }
  func.func @transform_9(%arg0: i32) -> (i32, i32, i32) {
    %c0_i32 = arith.constant 0 : i32
    %c0_i32_0 = arith.constant 0 : i32
    %c0_i32_1 = arith.constant 0 : i32
    return %arg0, %c0_i32, %c0_i32_0 : i32, i32, i32
  }
}

</mosaic_0001>

<llo_original>
// kernel: tpu_custom_call.1
$region0: #{tpu_custom_call.1}
  #allocation0 [shape = 'u32[]', space=smem, size = 0x4, offset = 0x4, fixed_abs, tag = 'smem constant byte address 0x4 - core index']
  #allocation1 [shape = 'u32[144,128]{1,0:T(1,128)}', space=vmem, size = 0x12000, scoped, tag = 'internal scratch']
  %s0 = inlined_call_operand.vmem [shape: f32[2,16,8], index: 0, kind: input, shape index: {}]
  %s1 = inlined_call_operand.vmem [shape: f32[24,32], index: 1, kind: input, shape index: {}]
  %s2 = inlined_call_operand.vmem [shape: f32[1,32], index: 2, kind: input, shape index: {}]
  %s3 = inlined_call_operand.vmem [shape: f32[96,32], index: 3, kind: input, shape index: {}]
  %s4 = inlined_call_operand.vmem [shape: f32[1,32], index: 4, kind: input, shape index: {}]
  %s5 = inlined_call_operand.vmem [shape: f32[96,32], index: 5, kind: input, shape index: {}]
  %s6 = inlined_call_operand.vmem [shape: f32[1,32], index: 6, kind: input, shape index: {}]
  %s7 = inlined_call_operand.vmem [shape: f32[96,8], index: 7, kind: input, shape index: {}]
  %s8 = inlined_call_operand.vmem [shape: f32[1,8], index: 8, kind: input, shape index: {}]
  %s9 = inlined_call_operand.vmem [shape: f32[2,16,8], index: 9, kind: output, shape index: {}]
  %s10 = sld [smem:[#allocation0]]
  $region69: #{tpu_custom_call.1} parent=0
    _
  %s12 = ssub.s32 1, %s10
  %s13 = scalar_select 0, %s12, %s10
  loop: start=0, step=1, limit=4
  $region2: #{tpu_custom_call.1} parent=0 // loop_pre_header
    _
  $region3: #{tpu_custom_call.1} parent=0 // loop_header
    %s15 = sphi 0, %s19
    %p16 = scmp.ge.s32.totalorder %s15, 4
    %s25 = sphi 0, %s27
    %s28 = sphi 0, %s25
    %s29 = sphi 0, %s28
    %s45 = sphi 0, %s29
    %s49 = sphi 0, %s49
    %s51 = sphi 0, %s49
    %s52 = sphi 0, %s51
    %s66 = sphi 0, %s52
    %s70 = sphi 0, %s70
    %s72 = sphi 0, %s70
    %s73 = sphi 0, %s72
    %s87 = sphi 0, %s73
    %s91 = sphi 0, %s91
    %s93 = sphi 0, %s91
    %s94 = sphi 0, %s93
    %s108 = sphi 0, %s94
    %s112 = sphi 0, %s112
    %s114 = sphi 0, %s112
    %s115 = sphi 0, %s114
    %s129 = sphi 0, %s115
    %s133 = sphi 0, %s133
    %s135 = sphi 0, %s133
    %s136 = sphi 0, %s135
    %s150 = sphi 0, %s136
    %s154 = sphi 0, %s154
    %s156 = sphi 0, %s154
    %s157 = sphi 0, %s156
    %s171 = sphi 0, %s157
    %s175 = sphi 0, %s175
    %s177 = sphi 0, %s175
    %s178 = sphi 0, %s177
    %s192 = sphi 0, %s178
    %s196 = sphi 0, %s196
    %s198 = sphi 0, %s196
    %s199 = sphi 0, %s198
    %s213 = sphi 0, %s199
    %s219 = sphi 0, %s221
    %s222 = sphi 0, %s219
    %s223 = sphi 0, %s222
    %s239 = sphi 0, %s223
  $region4: #{tpu_custom_call.1} parent=0 // loop_header_branch
    %18 = sbr.rel (%p16) target = $region8
  $region5: #{tpu_custom_call.1} parent=0 // loop_body
    %s20 = ssub.s32 %s15, 1
    %s21 = ssub.s32 %s15, 2
    %s22 = sadd.s32 %s15, 1
    %s23 = ssub.s32 %s15, %s22
    %p24 = scmp.eq.s32.totalorder %s23, 0
    %s26 = sadd.s32 %s25, 1
    %s27 = scalar_select %p24, %s25, %s26
    %p30 = pneg %p24
    %p31 = scmp.eq.s32.totalorder %s15, 1
    %p32 = por %p30, %p31
    %p33 = scmp.ne.s32.totalorder %s25, %s28
    %p34 = scmp.eq.s32.totalorder %s15, 0
    %p35 = por %p33, %p34
    %p36 = scmp.ne.s32.totalorder %s25, %s28
    %p37 = scmp.eq.s32.totalorder %s20, 1
    %p38 = por %p36, %p37
    %p39 = scmp.ne.s32.totalorder %s28, %s29
    %p40 = scmp.eq.s32.totalorder %s20, 0
    %p41 = por %p39, %p40
    %p42 = scmp.ne.s32.totalorder %s28, %s29
    %p43 = scmp.eq.s32.totalorder %s21, 1
    %p44 = por %p42, %p43
    %p46 = scmp.ne.s32.totalorder %s29, %s45
    %p47 = scmp.eq.s32.totalorder %s21, 0
    %p48 = por %p46, %p47
    %s50 = sadd.s32 %s49, 1
    %p53 = scmp.eq.s32.totalorder %s15, 1
    %p54 = scmp.ne.s32.totalorder %s49, %s51
    %p55 = scmp.eq.s32.totalorder %s15, 0
    %p56 = por %p54, %p55
    %p57 = scmp.ne.s32.totalorder %s49, %s51
    %p58 = scmp.eq.s32.totalorder %s20, 1
    %p59 = por %p57, %p58
    %p60 = scmp.ne.s32.totalorder %s51, %s52
    %p61 = scmp.eq.s32.totalorder %s20, 0
    %p62 = por %p60, %p61
    %p63 = scmp.ne.s32.totalorder %s51, %s52
    %p64 = scmp.eq.s32.totalorder %s21, 1
    %p65 = por %p63, %p64
    %p67 = scmp.ne.s32.totalorder %s52, %s66
    %p68 = scmp.eq.s32.totalorder %s21, 0
    %p69 = por %p67, %p68
    %s71 = sadd.s32 %s70, 1
    %p74 = scmp.eq.s32.totalorder %s15, 1
    %p75 = scmp.ne.s32.totalorder %s70, %s72
    %p76 = scmp.eq.s32.totalorder %s15, 0
    %p77 = por %p75, %p76
    %p78 = scmp.ne.s32.totalorder %s70, %s72
    %p79 = scmp.eq.s32.totalorder %s20, 1
    %p80 = por %p78, %p79
    %p81 = scmp.ne.s32.totalorder %s72, %s73
    %p82 = scmp.eq.s32.totalorder %s20, 0
    %p83 = por %p81, %p82
    %p84 = scmp.ne.s32.totalorder %s72, %s73
    %p85 = scmp.eq.s32.totalorder %s21, 1
    %p86 = por %p84, %p85
    %p88 = scmp.ne.s32.totalorder %s73, %s87
    %p89 = scmp.eq.s32.totalorder %s21, 0
    %p90 = por %p88, %p89
    %s92 = sadd.s32 %s91, 1
    %p95 = scmp.eq.s32.totalorder %s15, 1
    %p96 = scmp.ne.s32.totalorder %s91, %s93
    %p97 = scmp.eq.s32.totalorder %s15, 0
    %p98 = por %p96, %p97
    %p99 = scmp.ne.s32.totalorder %s91, %s93
    %p100 = scmp.eq.s32.totalorder %s20, 1
    %p101 = por %p99, %p100
    %p102 = scmp.ne.s32.totalorder %s93, %s94
    %p103 = scmp.eq.s32.totalorder %s20, 0
    %p104 = por %p102, %p103
    %p105 = scmp.ne.s32.totalorder %s93, %s94
    %p106 = scmp.eq.s32.totalorder %s21, 1
    %p107 = por %p105, %p106
    %p109 = scmp.ne.s32.totalorder %s94, %s108
    %p110 = scmp.eq.s32.totalorder %s21, 0
    %p111 = por %p109, %p110
    %s113 = sadd.s32 %s112, 1
    %p116 = scmp.eq.s32.totalorder %s15, 1
    %p117 = scmp.ne.s32.totalorder %s112, %s114
    %p118 = scmp.eq.s32.totalorder %s15, 0
    %p119 = por %p117, %p118
    %p120 = scmp.ne.s32.totalorder %s112, %s114
    %p121 = scmp.eq.s32.totalorder %s20, 1
    %p122 = por %p120, %p121
    %p123 = scmp.ne.s32.totalorder %s114, %s115
    %p124 = scmp.eq.s32.totalorder %s20, 0
    %p125 = por %p123, %p124
    %p126 = scmp.ne.s32.totalorder %s114, %s115
    %p127 = scmp.eq.s32.totalorder %s21, 1
    %p128 = por %p126, %p127
    %p130 = scmp.ne.s32.totalorder %s115, %s129
    %p131 = scmp.eq.s32.totalorder %s21, 0
    %p132 = por %p130, %p131
    %s134 = sadd.s32 %s133, 1
    %p137 = scmp.eq.s32.totalorder %s15, 1
    %p138 = scmp.ne.s32.totalorder %s133, %s135
    %p139 = scmp.eq.s32.totalorder %s15, 0
    %p140 = por %p138, %p139
    %p141 = scmp.ne.s32.totalorder %s133, %s135
    %p142 = scmp.eq.s32.totalorder %s20, 1
    %p143 = por %p141, %p142
    %p144 = scmp.ne.s32.totalorder %s135, %s136
    %p145 = scmp.eq.s32.totalorder %s20, 0
    %p146 = por %p144, %p145
    %p147 = scmp.ne.s32.totalorder %s135, %s136
    %p148 = scmp.eq.s32.totalorder %s21, 1
    %p149 = por %p147, %p148
    %p151 = scmp.ne.s32.totalorder %s136, %s150
    %p152 = scmp.eq.s32.totalorder %s21, 0
    %p153 = por %p151, %p152
    %s155 = sadd.s32 %s154, 1
    %p158 = scmp.eq.s32.totalorder %s15, 1
    %p159 = scmp.ne.s32.totalorder %s154, %s156
    %p160 = scmp.eq.s32.totalorder %s15, 0
    %p161 = por %p159, %p160
    %p162 = scmp.ne.s32.totalorder %s154, %s156
    %p163 = scmp.eq.s32.totalorder %s20, 1
    %p164 = por %p162, %p163
    %p165 = scmp.ne.s32.totalorder %s156, %s157
    %p166 = scmp.eq.s32.totalorder %s20, 0
    %p167 = por %p165, %p166
    %p168 = scmp.ne.s32.totalorder %s156, %s157
    %p169 = scmp.eq.s32.totalorder %s21, 1
    %p170 = por %p168, %p169
    %p172 = scmp.ne.s32.totalorder %s157, %s171
    %p173 = scmp.eq.s32.totalorder %s21, 0
    %p174 = por %p172, %p173
    %s176 = sadd.s32 %s175, 1
    %p179 = scmp.eq.s32.totalorder %s15, 1
    %p180 = scmp.ne.s32.totalorder %s175, %s177
    %p181 = scmp.eq.s32.totalorder %s15, 0
    %p182 = por %p180, %p181
    %p183 = scmp.ne.s32.totalorder %s175, %s177
    %p184 = scmp.eq.s32.totalorder %s20, 1
    %p185 = por %p183, %p184
    %p186 = scmp.ne.s32.totalorder %s177, %s178
    %p187 = scmp.eq.s32.totalorder %s20, 0
    %p188 = por %p186, %p187
    %p189 = scmp.ne.s32.totalorder %s177, %s178
    %p190 = scmp.eq.s32.totalorder %s21, 1
    %p191 = por %p189, %p190
    %p193 = scmp.ne.s32.totalorder %s178, %s192
    %p194 = scmp.eq.s32.totalorder %s21, 0
    %p195 = por %p193, %p194
    %s197 = sadd.s32 %s196, 1
    %p200 = scmp.eq.s32.totalorder %s15, 1
    %p201 = scmp.ne.s32.totalorder %s196, %s198
    %p202 = scmp.eq.s32.totalorder %s15, 0
    %p203 = por %p201, %p202
    %p204 = scmp.ne.s32.totalorder %s196, %s198
    %p205 = scmp.eq.s32.totalorder %s20, 1
    %p206 = por %p204, %p205
    %p207 = scmp.ne.s32.totalorder %s198, %s199
    %p208 = scmp.eq.s32.totalorder %s20, 0
    %p209 = por %p207, %p208
    %p210 = scmp.ne.s32.totalorder %s198, %s199
    %p211 = scmp.eq.s32.totalorder %s21, 1
    %p212 = por %p210, %p211
    %p214 = scmp.ne.s32.totalorder %s199, %s213
    %p215 = scmp.eq.s32.totalorder %s21, 0
    %p216 = por %p214, %p215
    %s217 = ssub.s32 %s15, %s22
    %p218 = scmp.eq.s32.totalorder %s217, 0
    %s220 = sadd.s32 %s219, 1
    %s221 = scalar_select %p218, %s219, %s220
    %p224 = pneg %p218
    %p225 = scmp.eq.s32.totalorder %s15, 1
    %p226 = por %p224, %p225
    %p227 = scmp.ne.s32.totalorder %s219, %s222
    %p228 = scmp.eq.s32.totalorder %s15, 0
    %p229 = por %p227, %p228
    %p230 = scmp.ne.s32.totalorder %s219, %s222
    %p231 = scmp.eq.s32.totalorder %s20, 1
    %p232 = por %p230, %p231
    %p233 = scmp.ne.s32.totalorder %s222, %s223
    %p234 = scmp.eq.s32.totalorder %s20, 0
    %p235 = por %p233, %p234
    %p236 = scmp.ne.s32.totalorder %s222, %s223
    %p237 = scmp.eq.s32.totalorder %s21, 1
    %p238 = por %p236, %p237
    %p240 = scmp.ne.s32.totalorder %s223, %s239
    %p241 = scmp.eq.s32.totalorder %s21, 0
    %p242 = por %p240, %p241
    %p243 = scmp.le.s32.totalorder 1, %s15
    %p244 = scmp.lt.s32.totalorder %s15, 3
    %p245 = pnand %p243, %p244
    %p246 = pneg %p245
    // Predicated region
    $region9: #{tpu_custom_call.1} parent=5 // pred_check
      _
    $region10: #{tpu_custom_call.1} parent=5 // pred_check_branch
      %248 = sbr.rel (%p245) target = $region12
    $region11: #{tpu_custom_call.1} parent=5 // pred_region
      %s249 = ssub.s32 %s15, 1
      // Predicated region
      $region13: #{tpu_custom_call.1} parent=11 // pred_check
        %p250 = pneg %p62
      $region14: #{tpu_custom_call.1} parent=11 // pred_check_branch
        %252 = sbr.rel (%p250) target = $region16
      $region15: #{tpu_custom_call.1} parent=11 // pred_region
        _
      $region16: #{tpu_custom_call.1} parent=11 // pred_fallthru
        _
      // Predicated region
      $region17: #{tpu_custom_call.1} parent=11 // pred_check
        %p253 = pneg %p83
      $region18: #{tpu_custom_call.1} parent=11 // pred_check_branch
        %255 = sbr.rel (%p253) target = $region20
      $region19: #{tpu_custom_call.1} parent=11 // pred_region
        _
      $region20: #{tpu_custom_call.1} parent=11 // pred_fallthru
        _
      // Predicated region
      $region21: #{tpu_custom_call.1} parent=11 // pred_check
        %p256 = pneg %p104
      $region22: #{tpu_custom_call.1} parent=11 // pred_check_branch
        %258 = sbr.rel (%p256) target = $region24
      $region23: #{tpu_custom_call.1} parent=11 // pred_region
        _
      $region24: #{tpu_custom_call.1} parent=11 // pred_fallthru
        _
      // Predicated region
      $region25: #{tpu_custom_call.1} parent=11 // pred_check
        %p259 = pneg %p125
      $region26: #{tpu_custom_call.1} parent=11 // pred_check_branch
        %261 = sbr.rel (%p259) target = $region28
      $region27: #{tpu_custom_call.1} parent=11 // pred_region
        _
      $region28: #{tpu_custom_call.1} parent=11 // pred_fallthru
        _
      // Predicated region
      $region29: #{tpu_custom_call.1} parent=11 // pred_check
        %p262 = pneg %p146
      $region30: #{tpu_custom_call.1} parent=11 // pred_check_branch
        %264 = sbr.rel (%p262) target = $region32
      $region31: #{tpu_custom_call.1} parent=11 // pred_region
        _
      $region32: #{tpu_custom_call.1} parent=11 // pred_fallthru
        _
      // Predicated region
      $region33: #{tpu_custom_call.1} parent=11 // pred_check
        %p265 = pneg %p167
      $region34: #{tpu_custom_call.1} parent=11 // pred_check_branch
        %267 = sbr.rel (%p265) target = $region36
      $region35: #{tpu_custom_call.1} parent=11 // pred_region
        _
      $region36: #{tpu_custom_call.1} parent=11 // pred_fallthru
        _
      // Predicated region
      $region37: #{tpu_custom_call.1} parent=11 // pred_check
        %p268 = pneg %p188
      $region38: #{tpu_custom_call.1} parent=11 // pred_check_branch
        %270 = sbr.rel (%p268) target = $region40
      $region39: #{tpu_custom_call.1} parent=11 // pred_region
        _
      $region40: #{tpu_custom_call.1} parent=11 // pred_fallthru
        _
      // Predicated region
      $region41: #{tpu_custom_call.1} parent=11 // pred_check
        %p271 = pneg %p209
      $region42: #{tpu_custom_call.1} parent=11 // pred_check_branch
        %273 = sbr.rel (%p271) target = $region44
      $region43: #{tpu_custom_call.1} parent=11 // pred_region
        _
      $region44: #{tpu_custom_call.1} parent=11 // pred_fallthru
        _
    $region12: #{tpu_custom_call.1} parent=5 // pred_fallthru
      _
    %p274 = scmp.lt.s32.totalorder %s15, 2
    // Predicated region
    $region45: #{tpu_custom_call.1} parent=5 // pred_check
      %p275 = pneg %p274
    $region46: #{tpu_custom_call.1} parent=5 // pred_check_branch
      %277 = sbr.rel (%p275) target = $region48
    $region47: #{tpu_custom_call.1} parent=5 // pred_region
      // Predicated region
      $region49: #{tpu_custom_call.1} parent=47 // pred_check
        %p278 = pneg %p35
      $region50: #{tpu_custom_call.1} parent=47 // pred_check_branch
        %280 = sbr.rel (%p278) target = $region52
      $region51: #{tpu_custom_call.1} parent=47 // pred_region
        %p281 = scmp.lt.s32.totalorder %s15, 1
        %s282 = scalar_select %p281, %s15, 1
        %s283 = smul.addr %s282, 2
        %s284 = smul.addr %s283, 8
        %s285 = scalar_lea.vmem %s0, %s284
      $region52: #{tpu_custom_call.1} parent=47 // pred_fallthru
        _
    $region48: #{tpu_custom_call.1} parent=5 // pred_fallthru
      _
    %p286 = scmp.le.s32.totalorder 1, %s15
    %p287 = scmp.lt.s32.totalorder %s15, 3
    %p288 = pnand %p286, %p287
    %p289 = pneg %p288
    // Predicated region
    $region53: #{tpu_custom_call.1} parent=5 // pred_check
      _
    $region54: #{tpu_custom_call.1} parent=5 // pred_check_branch
      %291 = sbr.rel (%p288) target = $region56
    $region55: #{tpu_custom_call.1} parent=5 // pred_region
      %s292 = ssub.s32 %s15, 1
      %p293 = scmp.lt.s32.totalorder %s20, 1
      %s294 = scalar_select %p293, %s20, 1
      %s295 = smul.addr %s294, 2
      %s296 = smul.addr %s295, 8
      %s297 = scalar_lea.vmem %s0, %s296
      %p298 = pneg %p41
      %p299 = pneg %p38
      %p300 = pneg %p62
      %p301 = pneg %p59
      %p302 = pneg %p83
      %p303 = pneg %p80
      %p304 = pneg %p104
      %p305 = pneg %p101
      %p306 = pneg %p125
      %p307 = pneg %p122
      %p308 = pneg %p146
      %p309 = pneg %p143
      %p310 = pneg %p167
      %p311 = pneg %p164
      %p312 = pneg %p188
      %p313 = pneg %p185
      %p314 = pneg %p209
      %p315 = pneg %p206
      %p316 = pneg %p235
      %p317 = pneg %p232
      %p318 = scmp.lt.s32.totalorder %s20, 1
      %s319 = scalar_select %p318, %s20, 1
      %s320 = smul.addr %s319, 2
      %s321 = smul.addr %s320, 8
      %s322 = scalar_lea.vmem %s9, %s321
      %p323 = scmp.lt.s32.totalorder %s20, 1
      %s324 = scalar_select %p323, %s20, 1
      %s325 = smul.addr %s324, 2
      %s326 = smul.addr %s325, 8
      %s327 = scalar_lea.vmem %s0, %s326
      %p328 = scmp.lt.s32.totalorder %s20, 1
      %s329 = scalar_select %p328, %s20, 1
      %s330 = smul.addr %s329, 2
      %s331 = smul.addr %s330, 8
      %s332 = scalar_lea.vmem %s9, %s331
      %v333 = vlaneseq
      %v334 = vshrl.u32 %v333, 7
      %v335 = vadd.s32 %v334, 8
      %vm336 = vcmp.lt.s32.totalorder %v334, 0
      %v337 = vsub.s32 0, %v334
      %v338 = vsel %vm336, %v337, %v334
      %v339 = vshrl.u32 %v338, 4
      %v340 = vand.u32 %v338, 15
      %v341 = vsub.s32 0, %v340
      %v342 = vsel %vm336, %v341, %v340
      %vm343 = vcmp.lt.s32.totalorder %v335, 0
      %v344 = vsub.s32 0, %v335
      %v345 = vsel %vm343, %v344, %v335
      %v346 = vshrl.u32 %v345, 4
      %v347 = vand.u32 %v345, 15
      %v348 = vsub.s32 0, %v347
      %v349 = vsel %vm343, %v348, %v347
      %vm350 = vcmp.ne.s32.totalorder %v342, 0
      %vm351 = vcmp.ne.s32.totalorder %v349, 0
      %vm352 = vcmp.lt.s32.totalorder %v342, 0
      %vm353 = vcmp.lt.s32.totalorder %v349, 0
      %vm354 = vmand %vm352, %vm350
      %vm355 = vmand %vm353, %vm351
      %v356 = vadd.s32 %v342, 16
      %v357 = vadd.s32 %v349, 16
      %v358 = vsel %vm354, %v356, %v342
      %v359 = vsel %vm355, %v357, %v349
      %vm360 = vcmp.ne.s32.totalorder %v358, 0
      %vm361 = vcmp.ne.s32.totalorder %v359, 0
      %vm362 = vcmp.ne.s32.totalorder %v358, 15
      %vm363 = vcmp.ne.s32.totalorder %v359, 15
      %v364 = vld [vmem:[%s327] sm:$0xff]
      %v365 = vld [vmem:[%s327 + $0x8] sm:$0xff]
      %v366 = vrot.slane %v364, 7
      %v367 = vrot.slane %v365, 7
      %vm368 = vcmp.lt.s32.totalorder %v334, 1
      %v369 = vsel %vm368, %v366, %v367
      %v370 = vsel %vm368, %v367, %v366
      %v371 = vsel %vm360, 1, 0
      %v372 = vsel %vm361, 1, 0
      %vm373 = vcmp.eq.s32.totalorder %v371, 1
      %vm374 = vcmp.eq.s32.totalorder %v372, 1
      %v375 = vsel %vm373, %v370, 0.0
      %v376 = vsel %vm374, %v369, 0.0
      %v377 = vrot.slane %v364, 1
      %v378 = vrot.slane %v365, 1
      %vm379 = vcmp.lt.s32.totalorder %v334, 7
      %v380 = vsel %vm379, %v377, %v378
      %v381 = vsel %vm379, %v378, %v377
      %v382 = vsel %vm362, 1, 0
      %v383 = vsel %vm363, 1, 0
      %vm384 = vcmp.eq.s32.totalorder %v382, 1
      %vm385 = vcmp.eq.s32.totalorder %v383, 1
      %v386 = vsel %vm384, %v380, 0.0
      %v387 = vsel %vm385, %v381, 0.0
      %390 = vrot.lane.b32.xlu0 %v364, 8
      %v391 = vpop.permute.xlu0 %390
      %392 = vrot.lane.b32.xlu0 %v365, 8
      %v393 = vpop.permute.xlu0 %392
      %398 = vrot.lane.b32.xlu0 %v386, 16
      %v399 = vpop.permute.xlu0 %398
      %400 = vrot.lane.b32.xlu0 %v387, 16
      %v401 = vpop.permute.xlu0 %400
      %vm404 = vcmask 64512
      %v405 = vsel %vm404, %v375, %v391
      %v406 = vsel %vm404, %v376, %v393
      %vm407 = vcmask 130048
      %v408 = vsel %vm407, %v405, %v399
      %v409 = vsel %vm407, %v406, %v401
      %v410 = vld [vmem:[%s1] sm:$0xff]
      %v411 = vld [vmem:[%s1 + $0x8] sm:$0xff]
      %v412 = vld [vmem:[%s1 + $0x10] sm:$0xff]
      %v413 = vld [vmem:[%s2] sm:$0x1]
      %v415 = vlaneseq
      %v416 = vshrl.u32 %v415, 7
      %v417 = vsub.s32 0, %v416
      %v418 = vrot.slane %v413, %v417
      %vm420 = vcmask 195584
      %v422 = vsel %vm420, %v408, 0
      %v425 = vsel %vm420, %v409, 0
      %427 = vmatprep.subr.mxu0 0.0
      %428 = vmatpush1.msra.mxu0 %v410
      %429 = vmatprep.subr.mxu0 0.0
      %430 = vmatpush1.msra.mxu0 %v411
      %431 = vmatprep.subr.mxu0 0.0
      %432 = vmatpush1.msra.mxu0 %v412
      %433 = vmatprep.subr.mxu0 0.0
      %434 = vmatpush1.msra.mxu0 0.0
      %435 = vmatprep.subr.mxu0 0.0
      %436 = vmatpush1.msra.mxu0 0.0
      %437 = vmatprep.subr.mxu0 0.0
      %438 = vmatpush1.msra.mxu0 0.0
      %439 = vmatprep.subr.mxu0 0.0
      %440 = vmatpush1.msra.mxu0 0.0
      %441 = vmatprep.subr.mxu0 0.0
      %442 = vmatpush1.msra.mxu0 0.0
      %443 = vmatprep.subr.mxu0 0.0
      %444 = vmatpush1.msra.mxu0 0.0
      %445 = vmatprep.subr.mxu0 0.0
      %446 = vmatpush1.msra.mxu0 0.0
      %447 = vmatprep.subr.mxu0 0.0
      %448 = vmatpush1.msra.mxu0 0.0
      %449 = vmatprep.subr.mxu0 0.0
      %450 = vmatpush1.msra.mxu0 0.0
      %451 = vmatprep.subr.mxu0 0.0
      %452 = vmatpush1.msra.mxu0 0.0
      %453 = vmatprep.subr.mxu0 0.0
      %454 = vmatpush1.msra.mxu0 0.0
      %455 = vmatprep.subr.mxu0 0.0
      %456 = vmatpush1.msra.mxu0 0.0
      %457 = vmatprep.subr.mxu0 0.0
      %458 = vmatpush1.msra.mxu0 0.0
      %459 = vmatprep.subr.mxu0 0.0
      %460 = vmatpush1.msra.mxu0 0.0
      %461 = vmatprep.subr.mxu0 0.0
      %462 = vmatpush1.msra.mxu0 0.0
      %463 = vmatprep.subr.mxu0 0.0
      %464 = vmatpush1.msra.mxu0 0.0
      %465 = vmatprep.subr.mxu0 0.0
      %466 = vmatpush1.msra.mxu0 0.0
      %467 = vmatprep.subr.mxu0 0.0
      %468 = vmatpush1.msra.mxu0 0.0
      %469 = vmatprep.subr.mxu0 0.0
      %470 = vmatpush1.msra.mxu0 0.0
      %471 = vmatprep.subr.mxu0 0.0
      %472 = vmatpush1.msra.mxu0 0.0
      %473 = vmatprep.subr.mxu0 0.0
      %474 = vmatpush1.msra.mxu0 0.0
      %475 = vmatprep.subr.mxu0 0.0
      %476 = vmatpush1.msra.mxu0 0.0
      %477 = vmatprep.subr.mxu0 0.0
      %478 = vmatpush1.msra.mxu0 0.0
      %479 = vmatprep.subr.mxu0 0.0
      %480 = vmatpush1.msra.mxu0 0.0
      %481 = vmatprep.subr.mxu0 0.0
      %482 = vmatpush1.msra.mxu0 0.0
      %483 = vmatprep.subr.mxu0 0.0
      %484 = vmatpush1.msra.mxu0 0.0
      %485 = vmatprep.subr.mxu0 0.0
      %486 = vmatpush1.msra.mxu0 0.0
      %487 = vmatprep.subr.mxu0 0.0
      %488 = vmatpush1.msra.mxu0 0.0
      %489 = vmatprep.subr.mxu0 0.0
      %490 = vmatpush1.msra.mxu0 0.0
      %491 = vmatprep.mubr.f32.mxu0 0.0
      %492 = vmatmul.mubr.f32.gmra.mrb[0].mxu0 %v422
      %v493 = vpop.f32.mrb[0].mxu0
      %v494 = vadd.f32 %v418, %v493
      %v495 = vpop.f32.mrb[0].mxu0
      %496 = vmatprep.mubr.f32.mxu0 0.0
      %497 = vmatmul.mubr.f32.gmra.mrb[0].mxu0 %v425
      %v498 = vpop.f32.mrb[0].mxu0
      %v499 = vadd.f32 %v418, %v498
      %v500 = vpop.f32.mrb[0].mxu0
      %501 = vdwg.mxu0
      %v502 = vmax.f32 %v494, 0.0
      %v503 = vmax.f32 %v499, 0.0
      %v504 = vrot.slane %v502, 7
      %v505 = vrot.slane %v503, 7
      %v506 = vsel %vm368, %v504, %v505
      %v507 = vsel %vm368, %v505, %v504
      %v508 = vsel %vm373, %v507, 0.0
      %v509 = vsel %vm374, %v506, 0.0
      %v510 = vrot.slane %v502, 1
      %v511 = vrot.slane %v503, 1
      %v512 = vsel %vm379, %v510, %v511
      %v513 = vsel %vm379, %v511, %v510
      %v514 = vsel %vm384, %v512, 0.0
      %v515 = vsel %vm385, %v513, 0.0
      %518 = vrot.lane.b32.xlu0 %v502, 32
      %v519 = vpop.permute.xlu0 %518
      %520 = vrot.lane.b32.xlu0 %v503, 32
      %v521 = vpop.permute.xlu0 %520
      %526 = vrot.lane.b32.xlu0 %v514, 64
      %v527 = vpop.permute.xlu0 %526
      %528 = vrot.lane.b32.xlu0 %v515, 64
      %v529 = vpop.permute.xlu0 %528
      %vm532 = vcmask 261120
      %v533 = vsel %vm532, %v508, %v519
      %v534 = vsel %vm532, %v509, %v521
      %vm535 = vcmask 523264
      %v536 = vsel %vm535, %v533, %v527
      %v537 = vsel %vm535, %v534, %v529
      %v538 = vld [vmem:[%s3] sm:$0xff]
      %v539 = vld [vmem:[%s3 + $0x8] sm:$0xff]
      %v540 = vld [vmem:[%s3 + $0x10] sm:$0xff]
      %v541 = vld [vmem:[%s3 + $0x18] sm:$0xff]
      %v542 = vld [vmem:[%s3 + $0x20] sm:$0xff]
      %v543 = vld [vmem:[%s3 + $0x28] sm:$0xff]
      %v544 = vld [vmem:[%s3 + $0x30] sm:$0xff]
      %v545 = vld [vmem:[%s3 + $0x38] sm:$0xff]
      %v546 = vld [vmem:[%s3 + $0x40] sm:$0xff]
      %v547 = vld [vmem:[%s3 + $0x48] sm:$0xff]
      %v548 = vld [vmem:[%s3 + $0x50] sm:$0xff]
      %v549 = vld [vmem:[%s3 + $0x58] sm:$0xff]
      %v550 = vld [vmem:[%s4] sm:$0x1]
      %v552 = vlaneseq
      %v553 = vshrl.u32 %v552, 7
      %v554 = vsub.s32 0, %v553
      %v555 = vrot.slane %v550, %v554
      %vm557 = vcmask 785408
      %v559 = vsel %vm557, %v536, 0
      %v562 = vsel %vm557, %v537, 0
      %564 = vmatprep.subr.mxu0 0.0
      %565 = vmatpush1.msra.mxu0 %v538
      %566 = vmatprep.subr.mxu0 0.0
      %567 = vmatpush1.msra.mxu0 %v539
      %568 = vmatprep.subr.mxu0 0.0
      %569 = vmatpush1.msra.mxu0 %v540
      %570 = vmatprep.subr.mxu0 0.0
      %571 = vmatpush1.msra.mxu0 %v541
      %572 = vmatprep.subr.mxu0 0.0
      %573 = vmatpush1.msra.mxu0 %v542
      %574 = vmatprep.subr.mxu0 0.0
      %575 = vmatpush1.msra.mxu0 %v543
      %576 = vmatprep.subr.mxu0 0.0
      %577 = vmatpush1.msra.mxu0 %v544
      %578 = vmatprep.subr.mxu0 0.0
      %579 = vmatpush1.msra.mxu0 %v545
      %580 = vmatprep.subr.mxu0 0.0
      %581 = vmatpush1.msra.mxu0 %v546
      %582 = vmatprep.subr.mxu0 0.0
      %583 = vmatpush1.msra.mxu0 %v547
      %584 = vmatprep.subr.mxu0 0.0
      %585 = vmatpush1.msra.mxu0 %v548
      %586 = vmatprep.subr.mxu0 0.0
      %587 = vmatpush1.msra.mxu0 %v549
      %588 = vmatprep.subr.mxu0 0.0
      %589 = vmatpush1.msra.mxu0 0.0
      %590 = vmatprep.subr.mxu0 0.0
      %591 = vmatpush1.msra.mxu0 0.0
      %592 = vmatprep.subr.mxu0 0.0
      %593 = vmatpush1.msra.mxu0 0.0
      %594 = vmatprep.subr.mxu0 0.0
      %595 = vmatpush1.msra.mxu0 0.0
      %596 = vmatprep.subr.mxu0 0.0
      %597 = vmatpush1.msra.mxu0 0.0
      %598 = vmatprep.subr.mxu0 0.0
      %599 = vmatpush1.msra.mxu0 0.0
      %600 = vmatprep.subr.mxu0 0.0
      %601 = vmatpush1.msra.mxu0 0.0
      %602 = vmatprep.subr.mxu0 0.0
      %603 = vmatpush1.msra.mxu0 0.0
      %604 = vmatprep.subr.mxu0 0.0
      %605 = vmatpush1.msra.mxu0 0.0
      %606 = vmatprep.subr.mxu0 0.0
      %607 = vmatpush1.msra.mxu0 0.0
      %608 = vmatprep.subr.mxu0 0.0
      %609 = vmatpush1.msra.mxu0 0.0
      %610 = vmatprep.subr.mxu0 0.0
      %611 = vmatpush1.msra.mxu0 0.0
      %612 = vmatprep.subr.mxu0 0.0
      %613 = vmatpush1.msra.mxu0 0.0
      %614 = vmatprep.subr.mxu0 0.0
      %615 = vmatpush1.msra.mxu0 0.0
      %616 = vmatprep.subr.mxu0 0.0
      %617 = vmatpush1.msra.mxu0 0.0
      %618 = vmatprep.subr.mxu0 0.0
      %619 = vmatpush1.msra.mxu0 0.0
      %620 = vmatprep.subr.mxu0 0.0
      %621 = vmatpush1.msra.mxu0 0.0
      %622 = vmatprep.subr.mxu0 0.0
      %623 = vmatpush1.msra.mxu0 0.0
      %624 = vmatprep.subr.mxu0 0.0
      %625 = vmatpush1.msra.mxu0 0.0
      %626 = vmatprep.subr.mxu0 0.0
      %627 = vmatpush1.msra.mxu0 0.0
      %628 = vmatprep.mubr.f32.mxu0 0.0
      %629 = vmatmul.mubr.f32.gmra.mrb[0].mxu0 %v559
      %v630 = vpop.f32.mrb[0].mxu0
      %v631 = vadd.f32 %v555, %v630
      %v632 = vpop.f32.mrb[0].mxu0
      %633 = vmatprep.mubr.f32.mxu0 0.0
      %634 = vmatmul.mubr.f32.gmra.mrb[0].mxu0 %v562
      %v635 = vpop.f32.mrb[0].mxu0
      %v636 = vadd.f32 %v555, %v635
      %v637 = vpop.f32.mrb[0].mxu0
      %638 = vdwg.mxu0
      %v639 = vmax.f32 %v631, 0.0
      %v640 = vmax.f32 %v636, 0.0
      %v641 = vrot.slane %v639, 7
      %v642 = vrot.slane %v640, 7
      %v643 = vsel %vm368, %v641, %v642
      %v644 = vsel %vm368, %v642, %v641
      %v645 = vsel %vm373, %v644, 0.0
      %v646 = vsel %vm374, %v643, 0.0
      %v647 = vrot.slane %v639, 1
      %v648 = vrot.slane %v640, 1
      %v649 = vsel %vm379, %v647, %v648
      %v650 = vsel %vm379, %v648, %v647
      %v651 = vsel %vm384, %v649, 0.0
      %v652 = vsel %vm385, %v650, 0.0
      %655 = vrot.lane.b32.xlu0 %v639, 32
      %v656 = vpop.permute.xlu0 %655
      %657 = vrot.lane.b32.xlu0 %v640, 32
      %v658 = vpop.permute.xlu0 %657
      %663 = vrot.lane.b32.xlu0 %v651, 64
      %v664 = vpop.permute.xlu0 %663
      %665 = vrot.lane.b32.xlu0 %v652, 64
      %v666 = vpop.permute.xlu0 %665
      %v669 = vsel %vm532, %v645, %v656
      %v670 = vsel %vm532, %v646, %v658
      %v671 = vsel %vm535, %v669, %v664
      %v672 = vsel %vm535, %v670, %v666
      %v673 = vld [vmem:[%s5] sm:$0xff]
      %v674 = vld [vmem:[%s5 + $0x8] sm:$0xff]
      %v675 = vld [vmem:[%s5 + $0x10] sm:$0xff]
      %v676 = vld [vmem:[%s5 + $0x18] sm:$0xff]
      %v677 = vld [vmem:[%s5 + $0x20] sm:$0xff]
      %v678 = vld [vmem:[%s5 + $0x28] sm:$0xff]
      %v679 = vld [vmem:[%s5 + $0x30] sm:$0xff]
      %v680 = vld [vmem:[%s5 + $0x38] sm:$0xff]
      %v681 = vld [vmem:[%s5 + $0x40] sm:$0xff]
      %v682 = vld [vmem:[%s5 + $0x48] sm:$0xff]
      %v683 = vld [vmem:[%s5 + $0x50] sm:$0xff]
      %v684 = vld [vmem:[%s5 + $0x58] sm:$0xff]
      %v685 = vld [vmem:[%s6] sm:$0x1]
      %v687 = vlaneseq
      %v688 = vshrl.u32 %v687, 7
      %v689 = vsub.s32 0, %v688
      %v690 = vrot.slane %v685, %v689
      %v693 = vsel %vm557, %v671, 0
      %v696 = vsel %vm557, %v672, 0
      %698 = vmatprep.subr.mxu0 0.0
      %699 = vmatpush1.msra.mxu0 %v673
      %700 = vmatprep.subr.mxu0 0.0
      %701 = vmatpush1.msra.mxu0 %v674
      %702 = vmatprep.subr.mxu0 0.0
      %703 = vmatpush1.msra.mxu0 %v675
      %704 = vmatprep.subr.mxu0 0.0
      %705 = vmatpush1.msra.mxu0 %v676
      %706 = vmatprep.subr.mxu0 0.0
      %707 = vmatpush1.msra.mxu0 %v677
      %708 = vmatprep.subr.mxu0 0.0
      %709 = vmatpush1.msra.mxu0 %v678
      %710 = vmatprep.subr.mxu0 0.0
      %711 = vmatpush1.msra.mxu0 %v679
      %712 = vmatprep.subr.mxu0 0.0
      %713 = vmatpush1.msra.mxu0 %v680
      %714 = vmatprep.subr.mxu0 0.0
      %715 = vmatpush1.msra.mxu0 %v681
      %716 = vmatprep.subr.mxu0 0.0
      %717 = vmatpush1.msra.mxu0 %v682
      %718 = vmatprep.subr.mxu0 0.0
      %719 = vmatpush1.msra.mxu0 %v683
      %720 = vmatprep.subr.mxu0 0.0
      %721 = vmatpush1.msra.mxu0 %v684
      %722 = vmatprep.subr.mxu0 0.0
      %723 = vmatpush1.msra.mxu0 0.0
      %724 = vmatprep.subr.mxu0 0.0
      %725 = vmatpush1.msra.mxu0 0.0
      %726 = vmatprep.subr.mxu0 0.0
      %727 = vmatpush1.msra.mxu0 0.0
      %728 = vmatprep.subr.mxu0 0.0
      %729 = vmatpush1.msra.mxu0 0.0
      %730 = vmatprep.subr.mxu0 0.0
      %731 = vmatpush1.msra.mxu0 0.0
      %732 = vmatprep.subr.mxu0 0.0
      %733 = vmatpush1.msra.mxu0 0.0
      %734 = vmatprep.subr.mxu0 0.0
      %735 = vmatpush1.msra.mxu0 0.0
      %736 = vmatprep.subr.mxu0 0.0
      %737 = vmatpush1.msra.mxu0 0.0
      %738 = vmatprep.subr.mxu0 0.0
      %739 = vmatpush1.msra.mxu0 0.0
      %740 = vmatprep.subr.mxu0 0.0
      %741 = vmatpush1.msra.mxu0 0.0
      %742 = vmatprep.subr.mxu0 0.0
      %743 = vmatpush1.msra.mxu0 0.0
      %744 = vmatprep.subr.mxu0 0.0
      %745 = vmatpush1.msra.mxu0 0.0
      %746 = vmatprep.subr.mxu0 0.0
      %747 = vmatpush1.msra.mxu0 0.0
      %748 = vmatprep.subr.mxu0 0.0
      %749 = vmatpush1.msra.mxu0 0.0
      %750 = vmatprep.subr.mxu0 0.0
      %751 = vmatpush1.msra.mxu0 0.0
      %752 = vmatprep.subr.mxu0 0.0
      %753 = vmatpush1.msra.mxu0 0.0
      %754 = vmatprep.subr.mxu0 0.0
      %755 = vmatpush1.msra.mxu0 0.0
      %756 = vmatprep.subr.mxu0 0.0
      %757 = vmatpush1.msra.mxu0 0.0
      %758 = vmatprep.subr.mxu0 0.0
      %759 = vmatpush1.msra.mxu0 0.0
      %760 = vmatprep.subr.mxu0 0.0
      %761 = vmatpush1.msra.mxu0 0.0
      %762 = vmatprep.mubr.f32.mxu0 0.0
      %763 = vmatmul.mubr.f32.gmra.mrb[0].mxu0 %v693
      %v764 = vpop.f32.mrb[0].mxu0
      %v765 = vadd.f32 %v690, %v764
      %v766 = vpop.f32.mrb[0].mxu0
      %767 = vmatprep.mubr.f32.mxu0 0.0
      %768 = vmatmul.mubr.f32.gmra.mrb[0].mxu0 %v696
      %v769 = vpop.f32.mrb[0].mxu0
      %v770 = vadd.f32 %v690, %v769
      %v771 = vpop.f32.mrb[0].mxu0
      %772 = vdwg.mxu0
      %v773 = vmax.f32 %v765, 0.0
      %v774 = vmax.f32 %v770, 0.0
      %v775 = vrot.slane %v773, 7
      %v776 = vrot.slane %v774, 7
      %v777 = vsel %vm368, %v775, %v776
      %v778 = vsel %vm368, %v776, %v775
      %v779 = vsel %vm373, %v778, 0.0
      %v780 = vsel %vm374, %v777, 0.0
      %v781 = vrot.slane %v773, 1
      %v782 = vrot.slane %v774, 1
      %v783 = vsel %vm379, %v781, %v782
      %v784 = vsel %vm379, %v782, %v781
      %v785 = vsel %vm384, %v783, 0.0
      %v786 = vsel %vm385, %v784, 0.0
      %789 = vrot.lane.b32.xlu0 %v773, 32
      %v790 = vpop.permute.xlu0 %789
      %791 = vrot.lane.b32.xlu0 %v774, 32
      %v792 = vpop.permute.xlu0 %791
      %797 = vrot.lane.b32.xlu0 %v785, 64
      %v798 = vpop.permute.xlu0 %797
      %799 = vrot.lane.b32.xlu0 %v786, 64
      %v800 = vpop.permute.xlu0 %799
      %v803 = vsel %vm532, %v779, %v790
      %v804 = vsel %vm532, %v780, %v792
      %v805 = vsel %vm535, %v803, %v798
      %v806 = vsel %vm535, %v804, %v800
      %v807 = vld [vmem:[%s7] sm:$0xff]
      %v808 = vld [vmem:[%s7 + $0x8] sm:$0xff]
      %v809 = vld [vmem:[%s7 + $0x10] sm:$0xff]
      %v810 = vld [vmem:[%s7 + $0x18] sm:$0xff]
      %v811 = vld [vmem:[%s7 + $0x20] sm:$0xff]
      %v812 = vld [vmem:[%s7 + $0x28] sm:$0xff]
      %v813 = vld [vmem:[%s7 + $0x30] sm:$0xff]
      %v814 = vld [vmem:[%s7 + $0x38] sm:$0xff]
      %v815 = vld [vmem:[%s7 + $0x40] sm:$0xff]
      %v816 = vld [vmem:[%s7 + $0x48] sm:$0xff]
      %v817 = vld [vmem:[%s7 + $0x50] sm:$0xff]
      %v818 = vld [vmem:[%s7 + $0x58] sm:$0xff]
      %v819 = vld [vmem:[%s8] sm:$0x1]
      %v821 = vlaneseq
      %v822 = vshrl.u32 %v821, 7
      %v823 = vsub.s32 0, %v822
      %v824 = vrot.slane %v819, %v823
      %v827 = vsel %vm557, %v805, 0
      %v830 = vsel %vm557, %v806, 0
      %832 = vmatprep.subr.mxu0 0.0
      %833 = vmatpush1.msra.mxu0 %v807
      %834 = vmatprep.subr.mxu0 0.0
      %835 = vmatpush1.msra.mxu0 %v808
      %836 = vmatprep.subr.mxu0 0.0
      %837 = vmatpush1.msra.mxu0 %v809
      %838 = vmatprep.subr.mxu0 0.0
      %839 = vmatpush1.msra.mxu0 %v810
      %840 = vmatprep.subr.mxu0 0.0
      %841 = vmatpush1.msra.mxu0 %v811
      %842 = vmatprep.subr.mxu0 0.0
      %843 = vmatpush1.msra.mxu0 %v812
      %844 = vmatprep.subr.mxu0 0.0
      %845 = vmatpush1.msra.mxu0 %v813
      %846 = vmatprep.subr.mxu0 0.0
      %847 = vmatpush1.msra.mxu0 %v814
      %848 = vmatprep.subr.mxu0 0.0
      %849 = vmatpush1.msra.mxu0 %v815
      %850 = vmatprep.subr.mxu0 0.0
      %851 = vmatpush1.msra.mxu0 %v816
      %852 = vmatprep.subr.mxu0 0.0
      %853 = vmatpush1.msra.mxu0 %v817
      %854 = vmatprep.subr.mxu0 0.0
      %855 = vmatpush1.msra.mxu0 %v818
      %856 = vmatprep.subr.mxu0 0.0
      %857 = vmatpush1.msra.mxu0 0.0
      %858 = vmatprep.subr.mxu0 0.0
      %859 = vmatpush1.msra.mxu0 0.0
      %860 = vmatprep.subr.mxu0 0.0
      %861 = vmatpush1.msra.mxu0 0.0
      %862 = vmatprep.subr.mxu0 0.0
      %863 = vmatpush1.msra.mxu0 0.0
      %864 = vmatprep.subr.mxu0 0.0
      %865 = vmatpush1.msra.mxu0 0.0
      %866 = vmatprep.subr.mxu0 0.0
      %867 = vmatpush1.msra.mxu0 0.0
      %868 = vmatprep.subr.mxu0 0.0
      %869 = vmatpush1.msra.mxu0 0.0
      %870 = vmatprep.subr.mxu0 0.0
      %871 = vmatpush1.msra.mxu0 0.0
      %872 = vmatprep.subr.mxu0 0.0
      %873 = vmatpush1.msra.mxu0 0.0
      %874 = vmatprep.subr.mxu0 0.0
      %875 = vmatpush1.msra.mxu0 0.0
      %876 = vmatprep.subr.mxu0 0.0
      %877 = vmatpush1.msra.mxu0 0.0
      %878 = vmatprep.subr.mxu0 0.0
      %879 = vmatpush1.msra.mxu0 0.0
      %880 = vmatprep.subr.mxu0 0.0
      %881 = vmatpush1.msra.mxu0 0.0
      %882 = vmatprep.subr.mxu0 0.0
      %883 = vmatpush1.msra.mxu0 0.0
      %884 = vmatprep.subr.mxu0 0.0
      %885 = vmatpush1.msra.mxu0 0.0
      %886 = vmatprep.subr.mxu0 0.0
      %887 = vmatpush1.msra.mxu0 0.0
      %888 = vmatprep.subr.mxu0 0.0
      %889 = vmatpush1.msra.mxu0 0.0
      %890 = vmatprep.subr.mxu0 0.0
      %891 = vmatpush1.msra.mxu0 0.0
      %892 = vmatprep.subr.mxu0 0.0
      %893 = vmatpush1.msra.mxu0 0.0
      %894 = vmatprep.subr.mxu0 0.0
      %895 = vmatpush1.msra.mxu0 0.0
      %896 = vmatprep.mubr.f32.mxu0 0.0
      %897 = vmatmul.mubr.f32.gmra.mrb[0].mxu0 %v827
      %v898 = vpop.f32.mrb[0].mxu0
      %v899 = vadd.f32 %v824, %v898
      %v900 = vpop.f32.mrb[0].mxu0
      %901 = vmatprep.mubr.f32.mxu0 0.0
      %902 = vmatmul.mubr.f32.gmra.mrb[0].mxu0 %v830
      %v903 = vpop.f32.mrb[0].mxu0
      %v904 = vadd.f32 %v824, %v903
      %v905 = vpop.f32.mrb[0].mxu0
      %906 = vdwg.mxu0
      %v907 = vmax.f32 %v899, 0.0
      %v908 = vmax.f32 %v904, 0.0
      %909 = vst.msk [vmem:[%s332] sm:$0xff] %vm404, %v907
      %910 = vst.msk [vmem:[%s332 + $0x8] sm:$0xff] %vm404, %v908
      %p911 = scmp.lt.s32.totalorder %s20, 1
      %s912 = scalar_select %p911, %s20, 1
      %s913 = smul.addr %s912, 2
      %s914 = smul.addr %s913, 8
      %s915 = scalar_lea.vmem %s9, %s914
      // Predicated region
      $region57: #{tpu_custom_call.1} parent=55 // pred_check
        %p916 = pneg %p232
      $region58: #{tpu_custom_call.1} parent=55 // pred_check_branch
        %918 = sbr.rel (%p916) target = $region60
      $region59: #{tpu_custom_call.1} parent=55 // pred_region
        _
      $region60: #{tpu_custom_call.1} parent=55 // pred_fallthru
        _
    $region56: #{tpu_custom_call.1} parent=5 // pred_fallthru
      _
    %p919 = scmp.le.s32.totalorder 2, %s15
    // Predicated region
    $region61: #{tpu_custom_call.1} parent=5 // pred_check
      %p920 = pneg %p919
    $region62: #{tpu_custom_call.1} parent=5 // pred_check_branch
      %922 = sbr.rel (%p920) target = $region64
    $region63: #{tpu_custom_call.1} parent=5 // pred_region
      %s923 = ssub.s32 %s15, 2
      // Predicated region
      $region65: #{tpu_custom_call.1} parent=63 // pred_check
        %p924 = pneg %p238
      $region66: #{tpu_custom_call.1} parent=63 // pred_check_branch
        %926 = sbr.rel (%p924) target = $region68
      $region67: #{tpu_custom_call.1} parent=63 // pred_region
        %p927 = scmp.lt.s32.totalorder %s21, 1
        %s928 = scalar_select %p927, %s21, 1
        %s929 = smul.addr %s928, 2
        %s930 = smul.addr %s929, 8
        %s931 = scalar_lea.vmem %s9, %s930
      $region68: #{tpu_custom_call.1} parent=63 // pred_fallthru
        _
    $region64: #{tpu_custom_call.1} parent=5 // pred_fallthru
      _
  $region6: #{tpu_custom_call.1} parent=0 // loop_footer
    %s19 = sadd.s32 1, %s15
  $region7: #{tpu_custom_call.1} parent=0 // loop_footer_branch
    %14 = sbr.rel target = $region3
  $region8: #{tpu_custom_call.1} parent=0 // loop_exit
    _

</llo_original>
